<compile_context>
chip_gen: v5e
topology: v5e:2x2
jax: 0.10.0
libtpu: 0.0.40
codegen_flags: <defaults>
</compile_context>

<pallas_src>
import math

import jax
import jax.numpy as jnp
from jax.experimental import pallas as pl
from jax.experimental.pallas import tpu as pltpu

LOG_2PI = math.log(2.0 * math.pi)


def _round_up(x, m):
    return (x + m - 1) // m * m


def _cdiv(a, b):
    return -(-a // b)


def _device_kind():
    try:
        return jax.devices()[0].device_kind.lower()
    except Exception:  # pragma: no cover - defensive
        return ""


def default_config():
    """Chip-aware packing defaults.

    v6e / v7x (256x256 MXU): keep the fused block-diagonal layer-2 (one natural
    MXU tile) and use bf16 matmul operands (f32 accumulation).
    v5e / older (128x128 MXU): split layer-2 into two [128,128] dots (the fused
    block-diagonal would spend half its MXU passes on zero blocks) and keep f32.
    """
    kind = _device_kind()
    big_mxu = ("v6" in kind) or ("v7" in kind) or ("7x" in kind)
    return {
        "compute_dtype": jnp.bfloat16 if big_mxu else jnp.float32,
        "split_layer2": not big_mxu,
    }


# ----------------------------------------------------------------------------
# Static layout of the two packed parameter buffers.
# ----------------------------------------------------------------------------
def _layout(state_dim, hidden, action_dim, compute_dtype, split_layer2):
    S, H, A = state_dim, hidden, action_dim
    H2 = 2 * H
    if split_layer2 and (H % 128 != 0):
        split_layer2 = False  # split path needs 128-aligned lane slices
    # common lane width for input slab / narrow buffer / output slab
    LW = max(128, _round_up(max(S + A, 2 * A + 3), 128))
    lay = {"S": S, "H": H, "A": A, "H2": H2, "LW": LW,
           "split_l2": bool(split_layer2), "compute_dtype": compute_dtype}

    # wide buffer (dtype = compute_dtype), lane width 2H:
    #   rows [0:LW]       layer-1 weights, K zero-padded to the slab width
    #                     (rows 0:A zero <- eps lanes, rows A:A+S = [w1a|w1c])
    #   rows [OFF_W2:..]  layer-2: fused block-diag [2H,2H] or split [H,2H]
    #   row  OFF_B1/OFF_B2 concatenated biases (16-row spacing: bf16-safe)
    lay["OFF_W1"] = 0
    lay["OFF_W2"] = LW
    w2_rows = H if split_layer2 else H2
    lay["OFF_B1"] = lay["OFF_W2"] + w2_rows
    lay["OFF_B2"] = lay["OFF_B1"] + 16
    lay["ROWS_W"] = lay["OFF_B2"] + 16

    # narrow buffer (always f32), lane width LW:
    lay["OFF_WH"] = 0               # [2H, LW]: lanes 0:A = wa, lane A = wv
    lay["OFF_BH"] = H2              # bias row: lanes 0:A = ba, lane A = bv
    lay["OFF_CST"] = lay["OFF_BH"] + 8   # lanes 0:A = softplus(std)
    lay["OFF_I2V"] = lay["OFF_CST"] + 8  # lanes 0:A = 1/(2 std^2)
    lay["OFF_LPC"] = lay["OFF_I2V"] + 8  # lanes 0:A = -(log std + 0.5 log 2pi)
    lay["OFF_ENT"] = lay["OFF_LPC"] + 8  # lane 0    = summed entropy constant
    lay["ROWS_N"] = lay["OFF_ENT"] + 8
    return lay


def pack_params(params, state_dim, hidden, action_dim,
                compute_dtype=jnp.float32, split_layer2=None):
    """One-time packing of the 13 raw parameter arrays into 2 buffers."""
    if split_layer2 is None:
        split_layer2 = default_config()["split_layer2"]
    lay = _layout(state_dim, hidden, action_dim, compute_dtype, split_layer2)
    S, H, A, H2, LW = lay["S"], lay["H"], lay["A"], lay["H2"], lay["LW"]

    # ---- wide buffer: fused layer-1 + layer-2 + biases ----------------------
    p_wide = jnp.zeros((lay["ROWS_W"], H2), jnp.float32)
    w1_cat = jnp.concatenate([params["w1a"], params["w1c"]], axis=1)      # [S, 2H]
    p_wide = p_wide.at[lay["OFF_W1"] + A:lay["OFF_W1"] + A + S, :].set(w1_cat)
    if lay["split_l2"]:
        w2_cat = jnp.concatenate([params["w2a"], params["w2c"]], axis=1)  # [H, 2H]
        p_wide = p_wide.at[lay["OFF_W2"]:lay["OFF_W2"] + H, :].set(w2_cat)
    else:
        p_wide = p_wide.at[lay["OFF_W2"]:lay["OFF_W2"] + H, 0:H].set(params["w2a"])
        p_wide = p_wide.at[lay["OFF_W2"] + H:lay["OFF_W2"] + H2, H:H2].set(params["w2c"])
    p_wide = p_wide.at[lay["OFF_B1"], :].set(
        jnp.concatenate([params["b1a"][0], params["b1c"][0]]))
    p_wide = p_wide.at[lay["OFF_B2"], :].set(
        jnp.concatenate([params["b2a"][0], params["b2c"][0]]))
    p_wide = p_wide.astype(compute_dtype)

    # ---- narrow buffer (f32): lane-padded heads + bias row + constants -----
    p_nar = jnp.zeros((lay["ROWS_N"], LW), jnp.float32)
    p_nar = p_nar.at[lay["OFF_WH"]:lay["OFF_WH"] + H, 0:A].set(params["wa"])
    p_nar = p_nar.at[lay["OFF_WH"] + H:lay["OFF_WH"] + H2, A:A + 1].set(params["wv"])
    p_nar = p_nar.at[lay["OFF_BH"], 0:A].set(params["ba"][0])
    p_nar = p_nar.at[lay["OFF_BH"], A].set(params["bv"][0, 0])

    std = jnp.logaddexp(params["std"][0], 0.0)          # stable softplus, [A]
    log_std = jnp.log(std)
    p_nar = p_nar.at[lay["OFF_CST"], 0:A].set(std)
    p_nar = p_nar.at[lay["OFF_I2V"], 0:A].set(1.0 / (2.0 * std * std))
    p_nar = p_nar.at[lay["OFF_LPC"], 0:A].set(-(log_std + 0.5 * LOG_2PI))
    p_nar = p_nar.at[lay["OFF_ENT"], 0].set(jnp.sum(0.5 + 0.5 * LOG_2PI + log_std))

    return {"p_wide": p_wide, "p_narrow": p_nar, "layout": lay}


# ----------------------------------------------------------------------------
# Kernel
# ----------------------------------------------------------------------------
def _make_kernel(lay):
    H, H2, A, LW = lay["H"], lay["H2"], lay["A"], lay["LW"]
    OW1, OW2, OB1, OB2 = lay["OFF_W1"], lay["OFF_W2"], lay["OFF_B1"], lay["OFF_B2"]
    OWH, OBH = lay["OFF_WH"], lay["OFF_BH"]
    OCST, OI2V, OLPC, OENT = (lay["OFF_CST"], lay["OFF_I2V"],
                              lay["OFF_LPC"], lay["OFF_ENT"])
    split_l2 = lay["split_l2"]
    cdt = lay["compute_dtype"]

    def kernel(x_ref, pw_ref, pn_ref, out_ref):
        x = x_ref[...]                        # [bt, LW]; lanes 0:A = eps, A:A+S = state
        bt = x.shape[0]

        # --- fused actor|critic bodies (layer-1 K padded to slab width) -----
        h = jnp.dot(x.astype(cdt), pw_ref[OW1:OW1 + LW, :],
                    preferred_element_type=jnp.float32)
        h = jnp.maximum(h + pw_ref[OB1:OB1 + 1, :].astype(jnp.float32), 0.0)

        hc = h.astype(cdt)
        if split_l2:
            # two [bt,H]@[H,H] dots (128x128-MXU friendly, no zero blocks)
            h = jnp.concatenate(
                [jnp.dot(hc[:, 0:H], pw_ref[OW2:OW2 + H, 0:H],
                         preferred_element_type=jnp.float32),
                 jnp.dot(hc[:, H:H2], pw_ref[OW2:OW2 + H, H:H2],
                         preferred_element_type=jnp.float32)],
                axis=-1)
        else:
            # fused block-diagonal [2H,2H] — one natural 256x256 MXU tile
            h = jnp.dot(hc, pw_ref[OW2:OW2 + H2, :],
                        preferred_element_type=jnp.float32)
        h = jnp.maximum(h + pw_ref[OB2:OB2 + 1, :].astype(jnp.float32), 0.0)

        # --- fused heads: lanes 0:A = actor logits, lane A = value, rest 0 --
        head = jnp.dot(h, pn_ref[OWH:OWH + H2, :],
                       preferred_element_type=jnp.float32)
        head = head + pn_ref[OBH:OBH + 1, :]

        # --- distribution math at full lane width (same vreg count as sliced)
        mean = jnp.tanh(head)                                 # lanes 0:A = mean
        std_row = pn_ref[OCST:OCST + 1, :]                    # 0 outside lanes 0:A
        action = jnp.clip(mean + std_row * x, -1.0, 1.0)      # x lanes 0:A carry eps
        d = action - mean                                     # 0 outside lanes 0:A
        log_pi = jnp.sum(pn_ref[OLPC:OLPC + 1, :] - d * d * pn_ref[OI2V:OI2V + 1, :],
                         axis=-1, keepdims=True)              # [bt, 1]

        # --- assemble [bt, LW] output slab in registers -> ONE unmasked store
        # lanes: [0:A)=action, [A:2A)=mean, 2A=value, 2A+1=log_pi, 2A+2=entropy
        lane = jax.lax.broadcasted_iota(jnp.int32, (bt, LW), 1)
        out = jnp.where(lane < A, action, 0.0)
        for j in range(A):                      # A is small & static (pltpu.roll
            out = jnp.where(lane == A + j,      #  could replace this for large A)
                            mean[:, j:j + 1], out)
        out = jnp.where(lane == 2 * A, head[:, A:A + 1], out)        # value
        out = jnp.where(lane == 2 * A + 1, log_pi, out)
        out = jnp.where(lane == 2 * A + 2, pn_ref[OENT:OENT + 1, 0:1], out)
        out_ref[...] = out

    return kernel


# ----------------------------------------------------------------------------
# Wrapper
# ----------------------------------------------------------------------------
def _choose_tiles(batch, batch_tile, min_tiles):
    """Balanced batch tiling: amortize per-step overhead with large tiles while
    minimizing padded rows and keeping >=min_tiles grid steps when possible."""
    n_tiles = max(_cdiv(batch, batch_tile), 1)
    n_tiles = max(n_tiles, min(min_tiles, _cdiv(batch, 8)))   # v7x: use both TCs
    b_tile = _round_up(_cdiv(batch, n_tiles), 8)
    n_tiles = _cdiv(batch, b_tile)
    return b_tile, n_tiles


def a2c_forward(state, eps, packed, *, batch_tile=1024, min_grid_steps=2):
    lay = packed["layout"]
    S, A, LW = lay["S"], lay["A"], lay["LW"]
    B = state.shape[0]
    assert state.shape == (B, S) and eps.shape == (B, A)

    b_tile, n_tiles = _choose_tiles(B, batch_tile, min_grid_steps)
    Bp = b_tile * n_tiles

    # single lane-dense input slab: lanes 0:A = eps, lanes A:A+S = state
    slab = jnp.concatenate([eps, state], axis=1).astype(jnp.float32)
    slab = jnp.pad(slab, ((0, Bp - B), (0, LW - (A + S))))

    kernel = _make_kernel(lay)
    out = pl.pallas_call(
        kernel,
        out_shape=jax.ShapeDtypeStruct((Bp, LW), jnp.float32),
        grid_spec=pltpu.PrefetchScalarGridSpec(
            num_scalar_prefetch=0,
            grid=(n_tiles,),
            in_specs=[
                pl.BlockSpec((b_tile, LW), lambda i: (i, 0)),    # input slab (pipelined)
                # full-array, constant-index blocks -> fetched once, VMEM-resident
                pl.BlockSpec(packed["p_wide"].shape, lambda i: (0, 0)),
                pl.BlockSpec(packed["p_narrow"].shape, lambda i: (0, 0)),
            ],
            out_specs=pl.BlockSpec((b_tile, LW), lambda i: (i, 0)),
        ),
        compiler_params=pltpu.CompilerParams(
            dimension_semantics=("parallel",),   # batch tiles shard across TCs (v7x)
        ),
    )(slab, packed["p_wide"], packed["p_narrow"])

    out = out[:B]
    return {
        "actions": out[:, 0:A],
        "values": out[:, 2 * A:2 * A + 1],
        "log_pi": out[:, 2 * A + 1:2 * A + 2],
        "entropy": out[:, 2 * A + 2:2 * A + 3],
        "mean": out[:, A:2 * A],
    }


# ----------------------------------------------------------------------------
# Parameter init (PyTorch-Linear-like) + pure-JAX reference for validation
# ----------------------------------------------------------------------------
def init_params(key, state_dim, hidden, action_dim):
    def linear(k, fan_in, fan_out):
        kw, kb = jax.random.split(k)
        bound = 1.0 / math.sqrt(fan_in)
        w = jax.random.uniform(kw, (fan_in, fan_out), jnp.float32, -bound, bound)
        b = jax.random.uniform(kb, (1, fan_out), jnp.float32, -bound, bound)
        return w, b

    keys = jax.random.split(key, 6)
    w1a, b1a = linear(keys[0], state_dim, hidden)
    w2a, b2a = linear(keys[1], hidden, hidden)
    wa, ba = linear(keys[2], hidden, action_dim)
    w1c, b1c = linear(keys[3], state_dim, hidden)
    w2c, b2c = linear(keys[4], hidden, hidden)
    wv, bv = linear(keys[5], hidden, 1)
    std = jnp.ones((1, action_dim), jnp.float32)   # nn.Parameter(torch.ones(action_dim))
    return {"w1a": w1a, "b1a": b1a, "w2a": w2a, "b2a": b2a, "wa": wa, "ba": ba,
            "w1c": w1c, "b1c": b1c, "w2c": w2c, "b2c": b2c, "wv": wv, "bv": bv,
            "std": std}


def a2c_reference(state, eps, params):
    hp = jax.lax.Precision.HIGHEST

    def body(x, w1, b1, w2, b2):
        h = jnp.maximum(jnp.dot(x, w1, precision=hp) + b1, 0.0)
        return jnp.maximum(jnp.dot(h, w2, precision=hp) + b2, 0.0)

    ha = body(state, params["w1a"], params["b1a"], params["w2a"], params["b2a"])
    hc = body(state, params["w1c"], params["b1c"], params["w2c"], params["b2c"])
    mean = jnp.tanh(jnp.dot(ha, params["wa"], precision=hp) + params["ba"])
    value = jnp.dot(hc, params["wv"], precision=hp) + params["bv"]
    std = jnp.logaddexp(params["std"], 0.0)
    action = jnp.clip(mean + std * eps, -1.0, 1.0)
    logp = -((action - mean) ** 2) / (2.0 * std * std) - jnp.log(std) - 0.5 * LOG_2PI
    log_pi = jnp.sum(logp, axis=-1, keepdims=True)
    ent = jnp.broadcast_to(0.5 + 0.5 * LOG_2PI + jnp.log(std), mean.shape)
    entropy = jnp.sum(ent, axis=-1, keepdims=True)
    return {"actions": action, "values": value, "log_pi": log_pi,
            "entropy": entropy, "mean": mean}


if __name__ == "__main__":
    B, S, H, A = 12, 16, 128, 4   # hidden_units=(128, 128) as in the module default

    key = jax.random.PRNGKey(0)
    k_params, k_state, k_eps = jax.random.split(key, 3)

    params = init_params(k_params, S, H, A)
    state = jax.random.normal(k_state, (B, S), jnp.float32)
    eps = jax.random.normal(k_eps, (B, A), jnp.float32)   # external N(0,1) noise

    ref = a2c_reference(state, eps, params)

    # ---- primary path: f32 matmul operands, chip-auto layer-2 layout -------
    packed = pack_params(params, S, H, A, compute_dtype=jnp.float32)
    out = a2c_forward(state, eps, packed)
    jax.block_until_ready(out)

    assert out["actions"].shape == (B, A)
    assert out["values"].shape == (B, 1)
    assert out["log_pi"].shape == (B, 1)
    assert out["entropy"].shape == (B, 1)
    assert out["mean"].shape == (B, A)
    for k in ("actions", "values", "log_pi", "entropy", "mean"):
        assert jnp.allclose(out[k], ref[k], atol=2e-3, rtol=2e-3), k

    # ---- secondary path: bf16 matmul operands (v6e/v7x recipe) + the other
    # layer-2 packing; validated at a loose tolerance (bf16 operand rounding).
    packed_alt = pack_params(params, S, H, A, compute_dtype=jnp.bfloat16,
                             split_layer2=not packed["layout"]["split_l2"])
    out_alt = a2c_forward(state, eps, packed_alt)
    jax.block_until_ready(out_alt)
    for k in ("actions", "values", "log_pi", "entropy", "mean"):
        assert jnp.allclose(out_alt[k], ref[k], atol=1e-1, rtol=1e-1), k

    print("KERNEL_OK")
</pallas_src>

<mosaic_0001>
module attributes {stable_mosaic.version = 11 : i64} {
  func.func @kernel(%arg0: i32, %arg1: memref<8x128xf32, #tpu.memory_space<vmem>>, %arg2: memref<288x256xf32, #tpu.memory_space<vmem>>, %arg3: memref<296x128xf32, #tpu.memory_space<vmem>>, %arg4: memref<8x128xf32, #tpu.memory_space<vmem>>) attributes {dimension_semantics = [#tpu.dimension_semantics<parallel>], iteration_bounds = array<i64: 2>, scalar_prefetch = 0 : i64, scratch_operands = 0 : i64, tpu.core_type = #tpu.core_type<tc>, window_params = [{transform_indices = @transform_0, window_bounds = array<i64: 8, 128>}, {pipeline_mode = #tpu.pipeline_mode<synchronous>, transform_indices = @transform_1, window_bounds = array<i64: 288, 256>}, {pipeline_mode = #tpu.pipeline_mode<synchronous>, transform_indices = @transform_2, window_bounds = array<i64: 296, 128>}, {transform_indices = @transform_3, window_bounds = array<i64: 8, 128>}]} {
    %c0 = arith.constant 0 : index
    %c0_0 = arith.constant 0 : index
    %0 = vector.load %arg1[%c0, %c0_0] : memref<8x128xf32, #tpu.memory_space<vmem>>, vector<8x128xf32>
    %c0_1 = arith.constant 0 : index
    %c0_2 = arith.constant 0 : index
    %1 = vector.load %arg2[%c0_1, %c0_2] : memref<288x256xf32, #tpu.memory_space<vmem>>, vector<128x256xf32>
    %cst = arith.constant dense<0.000000e+00> : vector<8x256xf32>
    %2 = tpu.matmul %0, %1, %cst {dimension_numbers = #tpu.dot_dimension_numbers<[1], [0], [0], [1], [0, 0, 1, 1], [], []>} : vector<8x128xf32>, vector<128x256xf32>, vector<8x256xf32> -> vector<8x256xf32>
    %c256 = arith.constant 256 : index
    %c0_3 = arith.constant 0 : index
    %3 = vector.load %arg2[%c256, %c0_3] : memref<288x256xf32, #tpu.memory_space<vmem>>, vector<1x256xf32>
    %4 = vector.broadcast %3 : vector<1x256xf32> to vector<8x256xf32>
    %5 = arith.addf %2, %4 : vector<8x256xf32>
    %cst_4 = arith.constant 0.000000e+00 : f32
    %6 = vector.broadcast %cst_4 : f32 to vector<8x256xf32>
    %7 = arith.maximumf %5, %6 : vector<8x256xf32>
    %8 = vector.extract_strided_slice %7 {offsets = [0, 0], sizes = [8, 128], strides = [1, 1]} : vector<8x256xf32> to vector<8x128xf32>
    %c128 = arith.constant 128 : index
    %c0_5 = arith.constant 0 : index
    %9 = vector.load %arg2[%c128, %c0_5] : memref<288x256xf32, #tpu.memory_space<vmem>>, vector<128x128xf32>
    %cst_6 = arith.constant dense<0.000000e+00> : vector<8x128xf32>
    %10 = tpu.matmul %8, %9, %cst_6 {dimension_numbers = #tpu.dot_dimension_numbers<[1], [0], [0], [1], [0, 0, 1, 1], [], []>} : vector<8x128xf32>, vector<128x128xf32>, vector<8x128xf32> -> vector<8x128xf32>
    %11 = vector.extract_strided_slice %7 {offsets = [0, 128], sizes = [8, 128], strides = [1, 1]} : vector<8x256xf32> to vector<8x128xf32>
    %c128_7 = arith.constant 128 : index
    %c128_8 = arith.constant 128 : index
    %12 = vector.load %arg2[%c128_7, %c128_8] : memref<288x256xf32, #tpu.memory_space<vmem>>, vector<128x128xf32>
    %cst_9 = arith.constant dense<0.000000e+00> : vector<8x128xf32>
    %13 = tpu.matmul %11, %12, %cst_9 {dimension_numbers = #tpu.dot_dimension_numbers<[1], [0], [0], [1], [0, 0, 1, 1], [], []>} : vector<8x128xf32>, vector<128x128xf32>, vector<8x128xf32> -> vector<8x128xf32>
    %14 = tpu.concatenate %10, %13 in 1 : vector<8x128xf32>, vector<8x128xf32> -> vector<8x256xf32>
    %c272 = arith.constant 272 : index
    %c0_10 = arith.constant 0 : index
    %15 = vector.load %arg2[%c272, %c0_10] : memref<288x256xf32, #tpu.memory_space<vmem>>, vector<1x256xf32>
    %16 = vector.broadcast %15 : vector<1x256xf32> to vector<8x256xf32>
    %17 = arith.addf %14, %16 : vector<8x256xf32>
    %cst_11 = arith.constant 0.000000e+00 : f32
    %18 = vector.broadcast %cst_11 : f32 to vector<8x256xf32>
    %19 = arith.maximumf %17, %18 : vector<8x256xf32>
    %c0_12 = arith.constant 0 : index
    %c0_13 = arith.constant 0 : index
    %20 = vector.load %arg3[%c0_12, %c0_13] : memref<296x128xf32, #tpu.memory_space<vmem>>, vector<256x128xf32>
    %cst_14 = arith.constant dense<0.000000e+00> : vector<8x128xf32>
    %21 = tpu.matmul %19, %20, %cst_14 {dimension_numbers = #tpu.dot_dimension_numbers<[1], [0], [0], [1], [0, 0, 1, 1], [], []>} : vector<8x256xf32>, vector<256x128xf32>, vector<8x128xf32> -> vector<8x128xf32>
    %c256_15 = arith.constant 256 : index
    %c0_16 = arith.constant 0 : index
    %22 = vector.load %arg3[%c256_15, %c0_16] : memref<296x128xf32, #tpu.memory_space<vmem>>, vector<1x128xf32>
    %23 = vector.broadcast %22 : vector<1x128xf32> to vector<8x128xf32>
    %24 = arith.addf %21, %23 : vector<8x128xf32>
    %25 = math.tanh %24 : vector<8x128xf32>
    %c264 = arith.constant 264 : index
    %c0_17 = arith.constant 0 : index
    %26 = vector.load %arg3[%c264, %c0_17] : memref<296x128xf32, #tpu.memory_space<vmem>>, vector<1x128xf32>
    %27 = vector.broadcast %26 : vector<1x128xf32> to vector<8x128xf32>
    %28 = arith.mulf %27, %0 : vector<8x128xf32>
    %29 = arith.addf %25, %28 : vector<8x128xf32>
    %cst_18 = arith.constant -1.000000e+00 : f32
    %cst_19 = arith.constant 1.000000e+00 : f32
    %30 = vector.broadcast %cst_18 : f32 to vector<8x128xf32>
    %31 = arith.maximumf %30, %29 : vector<8x128xf32>
    %32 = vector.broadcast %cst_19 : f32 to vector<8x128xf32>
    %33 = arith.minimumf %32, %31 : vector<8x128xf32>
    %34 = arith.subf %33, %25 : vector<8x128xf32>
    %c280 = arith.constant 280 : index
    %c0_20 = arith.constant 0 : index
    %35 = vector.load %arg3[%c280, %c0_20] : memref<296x128xf32, #tpu.memory_space<vmem>>, vector<1x128xf32>
    %36 = arith.mulf %34, %34 : vector<8x128xf32>
    %c272_21 = arith.constant 272 : index
    %c0_22 = arith.constant 0 : index
    %37 = vector.load %arg3[%c272_21, %c0_22] : memref<296x128xf32, #tpu.memory_space<vmem>>, vector<1x128xf32>
    %38 = vector.broadcast %37 : vector<1x128xf32> to vector<8x128xf32>
    %39 = arith.mulf %36, %38 : vector<8x128xf32>
    %40 = vector.broadcast %35 : vector<1x128xf32> to vector<8x128xf32>
    %41 = arith.subf %40, %39 : vector<8x128xf32>
    %cst_23 = arith.constant dense<0.000000e+00> : vector<8xf32>
    %42 = vector.multi_reduction <add>, %41, %cst_23 [1] : vector<8x128xf32> to vector<8xf32>
    %43 = vector.shape_cast %42 : vector<8xf32> to vector<8x1xf32>
    %44 = tpu.iota {dimensions = array<i32: 1>} : vector<8x128xi32>
    %c4_i32 = arith.constant 4 : i32
    %45 = vector.broadcast %c4_i32 : i32 to vector<8x128xi32>
    %46 = arith.cmpi slt, %44, %45 : vector<8x128xi32>
    %cst_24 = arith.constant 0.000000e+00 : f32
    %47 = vector.broadcast %cst_24 : f32 to vector<8x128xf32>
    %48 = arith.select %46, %33, %47 : vector<8x128xi1>, vector<8x128xf32>
    %c4_i32_25 = arith.constant 4 : i32
    %49 = vector.broadcast %c4_i32_25 : i32 to vector<8x128xi32>
    %50 = arith.cmpi eq, %44, %49 : vector<8x128xi32>
    %51 = vector.extract_strided_slice %25 {offsets = [0, 0], sizes = [8, 1], strides = [1, 1]} : vector<8x128xf32> to vector<8x1xf32>
    %52 = vector.shape_cast %51 : vector<8x1xf32> to vector<8x1xf32>
    %53 = vector.broadcast %52 : vector<8x1xf32> to vector<8x128xf32>
    %54 = arith.select %50, %53, %48 : vector<8x128xi1>, vector<8x128xf32>
    %c5_i32 = arith.constant 5 : i32
    %55 = vector.broadcast %c5_i32 : i32 to vector<8x128xi32>
    %56 = arith.cmpi eq, %44, %55 : vector<8x128xi32>
    %57 = vector.extract_strided_slice %25 {offsets = [0, 1], sizes = [8, 1], strides = [1, 1]} : vector<8x128xf32> to vector<8x1xf32>
    %58 = vector.shape_cast %57 : vector<8x1xf32> to vector<8x1xf32>
    %59 = vector.broadcast %58 : vector<8x1xf32> to vector<8x128xf32>
    %60 = arith.select %56, %59, %54 : vector<8x128xi1>, vector<8x128xf32>
    %c6_i32 = arith.constant 6 : i32
    %61 = vector.broadcast %c6_i32 : i32 to vector<8x128xi32>
    %62 = arith.cmpi eq, %44, %61 : vector<8x128xi32>
    %63 = vector.extract_strided_slice %25 {offsets = [0, 2], sizes = [8, 1], strides = [1, 1]} : vector<8x128xf32> to vector<8x1xf32>
    %64 = vector.shape_cast %63 : vector<8x1xf32> to vector<8x1xf32>
    %65 = vector.broadcast %64 : vector<8x1xf32> to vector<8x128xf32>
    %66 = arith.select %62, %65, %60 : vector<8x128xi1>, vector<8x128xf32>
    %c7_i32 = arith.constant 7 : i32
    %67 = vector.broadcast %c7_i32 : i32 to vector<8x128xi32>
    %68 = arith.cmpi eq, %44, %67 : vector<8x128xi32>
    %69 = vector.extract_strided_slice %25 {offsets = [0, 3], sizes = [8, 1], strides = [1, 1]} : vector<8x128xf32> to vector<8x1xf32>
    %70 = vector.shape_cast %69 : vector<8x1xf32> to vector<8x1xf32>
    %71 = vector.broadcast %70 : vector<8x1xf32> to vector<8x128xf32>
    %72 = arith.select %68, %71, %66 : vector<8x128xi1>, vector<8x128xf32>
    %c8_i32 = arith.constant 8 : i32
    %73 = vector.broadcast %c8_i32 : i32 to vector<8x128xi32>
    %74 = arith.cmpi eq, %44, %73 : vector<8x128xi32>
    %75 = vector.extract_strided_slice %24 {offsets = [0, 4], sizes = [8, 1], strides = [1, 1]} : vector<8x128xf32> to vector<8x1xf32>
    %76 = vector.shape_cast %75 : vector<8x1xf32> to vector<8x1xf32>
    %77 = vector.broadcast %76 : vector<8x1xf32> to vector<8x128xf32>
    %78 = arith.select %74, %77, %72 : vector<8x128xi1>, vector<8x128xf32>
    %c9_i32 = arith.constant 9 : i32
    %79 = vector.broadcast %c9_i32 : i32 to vector<8x128xi32>
    %80 = arith.cmpi eq, %44, %79 : vector<8x128xi32>
    %81 = vector.shape_cast %43 : vector<8x1xf32> to vector<8x1xf32>
    %82 = vector.broadcast %81 : vector<8x1xf32> to vector<8x128xf32>
    %83 = arith.select %80, %82, %78 : vector<8x128xi1>, vector<8x128xf32>
    %c10_i32 = arith.constant 10 : i32
    %84 = vector.broadcast %c10_i32 : i32 to vector<8x128xi32>
    %85 = arith.cmpi eq, %44, %84 : vector<8x128xi32>
    %c288 = arith.constant 288 : index
    %c0_26 = arith.constant 0 : index
    %86 = vector.load %arg3[%c288, %c0_26] : memref<296x128xf32, #tpu.memory_space<vmem>>, vector<1x1xf32>
    %87 = vector.shape_cast %86 : vector<1x1xf32> to vector<1x1xf32>
    %88 = vector.broadcast %87 : vector<1x1xf32> to vector<8x128xf32>
    %89 = arith.select %85, %88, %83 : vector<8x128xi1>, vector<8x128xf32>
    %c0_27 = arith.constant 0 : index
    %c0_28 = arith.constant 0 : index
    %90 = vector.load %arg4[%c0_27, %c0_28] : memref<8x128xf32, #tpu.memory_space<vmem>>, vector<8x128xf32>
    tpu.vector_store %arg4[%c0_27, %c0_28], %89 {strides = array<i32>} : memref<8x128xf32, #tpu.memory_space<vmem>>, vector<8x128xf32>,
    return
  }
  func.func @transform_0(%arg0: i32) -> (i32, i32) {
    %c0_i32 = arith.constant 0 : i32
    %c0_i32_0 = arith.constant 0 : i32
    return %arg0, %c0_i32 : i32, i32
  }
  func.func @transform_1(%arg0: i32) -> (i32, i32) {
    %c0_i32 = arith.constant 0 : i32
    %c0_i32_0 = arith.constant 0 : i32
    %c0_i32_1 = arith.constant 0 : i32
    return %c0_i32, %c0_i32_0 : i32, i32
  }
  func.func @transform_2(%arg0: i32) -> (i32, i32) {
    %c0_i32 = arith.constant 0 : i32
    %c0_i32_0 = arith.constant 0 : i32
    %c0_i32_1 = arith.constant 0 : i32
    return %c0_i32, %c0_i32_0 : i32, i32
  }
  func.func @transform_3(%arg0: i32) -> (i32, i32) {
    %c0_i32 = arith.constant 0 : i32
    %c0_i32_0 = arith.constant 0 : i32
    return %arg0, %c0_i32 : i32, i32
  }
}

</mosaic_0001>

<llo_original>
// kernel: tpu_custom_call.1
$region0: #{tpu_custom_call.1}
  #allocation0 [shape = 'u32[]', space=smem, size = 0x4, offset = 0x4, fixed_abs, tag = 'smem constant byte address 0x4 - core index']
  #allocation1 [shape = 'u32[72,128]{1,0:T(1,128)}', space=vmem, size = 0x9000, scoped, tag = 'internal scratch']
  %s0 = inlined_call_operand.hbm [shape: f32[16,128], index: 0, kind: input, shape index: {}]
  %s1 = inlined_call_operand.hbm [shape: f32[288,256], index: 1, kind: input, shape index: {}]
  %s2 = inlined_call_operand.hbm [shape: f32[296,128], index: 2, kind: input, shape index: {}]
  %s3 = inlined_call_operand.hbm [shape: f32[16,128], index: 3, kind: output, shape index: {}]
  %s4 = sld [smem:[#allocation0]]
  $region57: #{tpu_custom_call.1} parent=0
    _
  %s6 = ssub.s32 1, %s4
  %s7 = scalar_select 0, %s6, %s4
  $region1: #{tpu_custom_call.1} parent=0
    #allocation2 [shape = 'u8[8192]{0}', space=vmem, size = 0x2000, scoped, tag = 'input window, operand 0']
    #allocation3 [shape = 's32[2]{0}', space=sflag, size = 0x8, scoped, tag = 'scoped memory for tpu_custom_call.1']
    #allocation4 [shape = 's32[2]{0}', space=sflag, size = 0x8, scoped, tag = 'scoped memory for tpu_custom_call.1']
    #allocation5 [shape = 'u8[294912]{0}', space=vmem, size = 0x48000, scoped, tag = 'input window, operand 1, single buffered']
    #allocation6 [shape = 's32[1]{0}', space=sflag, size = 0x4, scoped, tag = 'scoped memory for tpu_custom_call.1']
    #allocation7 [shape = 'u8[151552]{0}', space=vmem, size = 0x25000, scoped, tag = 'input window, operand 2, single buffered']
    #allocation8 [shape = 'u8[8192]{0}', space=vmem, size = 0x2000, scoped, tag = 'output window, operand 0']
    %8 = vsyncpa [#allocation3], 0
    %s9 = scalar_lea.sflag [#allocation3], 1
    %10 = vsyncpa %s9, 0
    %11 = vsyncpa [#allocation6], 0
    %12 = vsyncpa [#allocation4], 0
    %s13 = scalar_lea.sflag [#allocation4], 1
    %14 = vsyncpa %s13, 0
    loop: start=0, step=1, limit=4
    $region2: #{tpu_custom_call.1} parent=1 // loop_pre_header
      _
    $region3: #{tpu_custom_call.1} parent=1 // loop_header
      %s16 = sphi 0, %s20
      %p17 = scmp.ge.s32.totalorder %s16, 4
      %s26 = sphi 0, %s28
      %s29 = sphi 0, %s26
      %s30 = sphi 0, %s29
      %s46 = sphi 0, %s30
      %s50 = sphi 0, %s50
      %s52 = sphi 0, %s50
      %s53 = sphi 0, %s52
      %s67 = sphi 0, %s53
      %s71 = sphi 0, %s71
      %s73 = sphi 0, %s71
      %s74 = sphi 0, %s73
      %s88 = sphi 0, %s74
      %s94 = sphi 0, %s96
      %s97 = sphi 0, %s94
      %s98 = sphi 0, %s97
      %s114 = sphi 0, %s98
    $region4: #{tpu_custom_call.1} parent=1 // loop_header_branch
      %19 = sbr.rel (%p17) target = $region8
    $region5: #{tpu_custom_call.1} parent=1 // loop_body
      %s21 = ssub.s32 %s16, 1
      %s22 = ssub.s32 %s16, 2
      %s23 = sadd.s32 %s16, 1
      %s24 = ssub.s32 %s16, %s23
      %p25 = scmp.eq.s32.totalorder %s24, 0
      %s27 = sadd.s32 %s26, 1
      %s28 = scalar_select %p25, %s26, %s27
      %p31 = pneg %p25
      %p32 = scmp.eq.s32.totalorder %s16, 1
      %p33 = por %p31, %p32
      %p34 = scmp.ne.s32.totalorder %s26, %s29
      %p35 = scmp.eq.s32.totalorder %s16, 0
      %p36 = por %p34, %p35
      %p37 = scmp.ne.s32.totalorder %s26, %s29
      %p38 = scmp.eq.s32.totalorder %s21, 1
      %p39 = por %p37, %p38
      %p40 = scmp.ne.s32.totalorder %s29, %s30
      %p41 = scmp.eq.s32.totalorder %s21, 0
      %p42 = por %p40, %p41
      %p43 = scmp.ne.s32.totalorder %s29, %s30
      %p44 = scmp.eq.s32.totalorder %s22, 1
      %p45 = por %p43, %p44
      %p47 = scmp.ne.s32.totalorder %s30, %s46
      %p48 = scmp.eq.s32.totalorder %s22, 0
      %p49 = por %p47, %p48
      %s51 = sadd.s32 %s50, 1
      %p54 = scmp.eq.s32.totalorder %s16, 1
      %p55 = scmp.ne.s32.totalorder %s50, %s52
      %p56 = scmp.eq.s32.totalorder %s16, 0
      %p57 = por %p55, %p56
      %p58 = scmp.ne.s32.totalorder %s50, %s52
      %p59 = scmp.eq.s32.totalorder %s21, 1
      %p60 = por %p58, %p59
      %p61 = scmp.ne.s32.totalorder %s52, %s53
      %p62 = scmp.eq.s32.totalorder %s21, 0
      %p63 = por %p61, %p62
      %p64 = scmp.ne.s32.totalorder %s52, %s53
      %p65 = scmp.eq.s32.totalorder %s22, 1
      %p66 = por %p64, %p65
      %p68 = scmp.ne.s32.totalorder %s53, %s67
      %p69 = scmp.eq.s32.totalorder %s22, 0
      %p70 = por %p68, %p69
      %s72 = sadd.s32 %s71, 1
      %p75 = scmp.eq.s32.totalorder %s16, 1
      %p76 = scmp.ne.s32.totalorder %s71, %s73
      %p77 = scmp.eq.s32.totalorder %s16, 0
      %p78 = por %p76, %p77
      %p79 = scmp.ne.s32.totalorder %s71, %s73
      %p80 = scmp.eq.s32.totalorder %s21, 1
      %p81 = por %p79, %p80
      %p82 = scmp.ne.s32.totalorder %s73, %s74
      %p83 = scmp.eq.s32.totalorder %s21, 0
      %p84 = por %p82, %p83
      %p85 = scmp.ne.s32.totalorder %s73, %s74
      %p86 = scmp.eq.s32.totalorder %s22, 1
      %p87 = por %p85, %p86
      %p89 = scmp.ne.s32.totalorder %s74, %s88
      %p90 = scmp.eq.s32.totalorder %s22, 0
      %p91 = por %p89, %p90
      %s92 = ssub.s32 %s16, %s23
      %p93 = scmp.eq.s32.totalorder %s92, 0
      %s95 = sadd.s32 %s94, 1
      %s96 = scalar_select %p93, %s94, %s95
      %p99 = pneg %p93
      %p100 = scmp.eq.s32.totalorder %s16, 1
      %p101 = por %p99, %p100
      %p102 = scmp.ne.s32.totalorder %s94, %s97
      %p103 = scmp.eq.s32.totalorder %s16, 0
      %p104 = por %p102, %p103
      %p105 = scmp.ne.s32.totalorder %s94, %s97
      %p106 = scmp.eq.s32.totalorder %s21, 1
      %p107 = por %p105, %p106
      %p108 = scmp.ne.s32.totalorder %s97, %s98
      %p109 = scmp.eq.s32.totalorder %s21, 0
      %p110 = por %p108, %p109
      %p111 = scmp.ne.s32.totalorder %s97, %s98
      %p112 = scmp.eq.s32.totalorder %s22, 1
      %p113 = por %p111, %p112
      %p115 = scmp.ne.s32.totalorder %s98, %s114
      %p116 = scmp.eq.s32.totalorder %s22, 0
      %p117 = por %p115, %p116
      %p118 = scmp.le.s32.totalorder 1, %s16
      %p119 = scmp.lt.s32.totalorder %s16, 3
      %p120 = pnand %p118, %p119
      %p121 = pneg %p120
      // Predicated region
      $region9: #{tpu_custom_call.1} parent=5 // pred_check
        _
      $region10: #{tpu_custom_call.1} parent=5 // pred_check_branch
        %123 = sbr.rel (%p120) target = $region12
      $region11: #{tpu_custom_call.1} parent=5 // pred_region
        %s124 = ssub.s32 %s16, 1
        // Predicated region
        $region13: #{tpu_custom_call.1} parent=11 // pred_check
          %p125 = pneg %p63
        $region14: #{tpu_custom_call.1} parent=11 // pred_check_branch
          %127 = sbr.rel (%p125) target = $region16
        $region15: #{tpu_custom_call.1} parent=11 // pred_region
          %129 = vsyncadd [#allocation6], 0
          %s130 = sshll.u32 %s1, 4
          %s131 = int_to_ptr.hbm [resolvable:$true] %s130
          %s132 = sshll.u32 [#allocation5], 4
          %s133 = int_to_ptr.vmem [resolvable:$true] %s132
          %138 = dma.hbm_to_vmem [thread:$0]  %s131, 9216, %s133, [#allocation6], 256, 256, 16
        $region16: #{tpu_custom_call.1} parent=11 // pred_fallthru
          _
        // Predicated region
        $region17: #{tpu_custom_call.1} parent=11 // pred_check
          %p139 = pneg %p84
        $region18: #{tpu_custom_call.1} parent=11 // pred_check_branch
          %141 = sbr.rel (%p139) target = $region20
        $region19: #{tpu_custom_call.1} parent=11 // pred_region
          %143 = vsyncadd [#allocation6], 0
          %s144 = sshll.u32 %s2, 4
          %s145 = int_to_ptr.hbm [resolvable:$true] %s144
          %s146 = sshll.u32 [#allocation7], 4
          %s147 = int_to_ptr.vmem [resolvable:$true] %s146
          %152 = dma.hbm_to_vmem [thread:$0]  %s145, 4736, %s147, [#allocation6], 128, 128, 8
        $region20: #{tpu_custom_call.1} parent=11 // pred_fallthru
          _
      $region12: #{tpu_custom_call.1} parent=5 // pred_fallthru
        _
      %p153 = scmp.lt.s32.totalorder %s16, 2
      // Predicated region
      $region21: #{tpu_custom_call.1} parent=5 // pred_check
        %p154 = pneg %p153
      $region22: #{tpu_custom_call.1} parent=5 // pred_check_branch
        %156 = sbr.rel (%p154) target = $region24
      $region23: #{tpu_custom_call.1} parent=5 // pred_region
        // Predicated region
        $region25: #{tpu_custom_call.1} parent=23 // pred_check
          %p157 = pneg %p36
        $region26: #{tpu_custom_call.1} parent=23 // pred_check_branch
          %159 = sbr.rel (%p157) target = $region28
        $region27: #{tpu_custom_call.1} parent=23 // pred_region
          %s160 = sand.u32 %s26, 1
          %s161 = scalar_lea.sflag [#allocation3], %s160
          %s162 = sand.u32 %s26, 1
          %s163 = smul.addr %s162, 8
          %s164 = scalar_lea.vmem [#allocation2], %s163
          %166 = vsyncadd %s161, 0
          %s167 = smul.addr %s16, 8
          %s168 = scalar_lea.hbm %s0, %s167
          %s170 = sshll.u32 %s168, 4
          %s171 = int_to_ptr.hbm [resolvable:$true] %s170
          %s172 = sshll.u32 %s164, 4
          %s173 = int_to_ptr.vmem [resolvable:$true] %s172
          %175 = dma.hbm_to_vmem [thread:$0]  %s171, 128, %s173, %s161
        $region28: #{tpu_custom_call.1} parent=23 // pred_fallthru
          _
      $region24: #{tpu_custom_call.1} parent=5 // pred_fallthru
        _
      %p176 = scmp.le.s32.totalorder 1, %s16
      %p177 = scmp.lt.s32.totalorder %s16, 3
      %p178 = pnand %p176, %p177
      %p179 = pneg %p178
      // Predicated region
      $region29: #{tpu_custom_call.1} parent=5 // pred_check
        _
      $region30: #{tpu_custom_call.1} parent=5 // pred_check_branch
        %181 = sbr.rel (%p178) target = $region32
      $region31: #{tpu_custom_call.1} parent=5 // pred_region
        %s182 = ssub.s32 %s16, 1
        %s183 = sand.u32 %s29, 1
        %s184 = scalar_lea.sflag [#allocation3], %s183
        %s185 = sand.u32 %s29, 1
        %s186 = smul.addr %s185, 8
        %s187 = scalar_lea.vmem [#allocation2], %s186
        // Predicated region
        $region33: #{tpu_custom_call.1} parent=31 // pred_check
          %p188 = pneg %p42
        $region34: #{tpu_custom_call.1} parent=31 // pred_check_branch
          %190 = sbr.rel (%p188) target = $region36
        $region35: #{tpu_custom_call.1} parent=31 // pred_region
          %192 = dma.done %s184, 128
        $region36: #{tpu_custom_call.1} parent=31 // pred_fallthru
          _
        // Predicated region
        $region37: #{tpu_custom_call.1} parent=31 // pred_check
          %p193 = pneg %p63
        $region38: #{tpu_custom_call.1} parent=31 // pred_check_branch
          %195 = sbr.rel (%p193) target = $region40
        $region39: #{tpu_custom_call.1} parent=31 // pred_region
          %197 = dma.done [#allocation6], 9216
        $region40: #{tpu_custom_call.1} parent=31 // pred_fallthru
          _
        // Predicated region
        $region41: #{tpu_custom_call.1} parent=31 // pred_check
          %p198 = pneg %p84
        $region42: #{tpu_custom_call.1} parent=31 // pred_check_branch
          %200 = sbr.rel (%p198) target = $region44
        $region43: #{tpu_custom_call.1} parent=31 // pred_region
          %202 = dma.done [#allocation6], 4736
        $region44: #{tpu_custom_call.1} parent=31 // pred_fallthru
          _
        %s203 = sand.u32 %s29, 1
        %s204 = scalar_lea.sflag [#allocation3], %s203
        %s205 = sand.u32 %s29, 1
        %s206 = smul.addr %s205, 8
        %s207 = scalar_lea.vmem [#allocation2], %s206
        %p208 = pneg %p42
        %p209 = pneg %p39
        %p210 = pneg %p63
        %p211 = pneg %p60
        %p212 = pneg %p84
        %p213 = pneg %p81
        %p214 = pneg %p110
        %p215 = pneg %p107
        %s216 = sand.u32 %s97, 1
        %s217 = scalar_lea.sflag [#allocation4], %s216
        %s218 = sand.u32 %s97, 1
        %s219 = smul.addr %s218, 8
        %s220 = scalar_lea.vmem [#allocation8], %s219
        %v221 = vld [vmem:[%s187] sm:$0xff]
        %v222 = vld [vmem:[#allocation5] sm:$0xff]
        %v223 = vld [vmem:[#allocation5 + $0x8] sm:$0xff]
        %v224 = vld [vmem:[#allocation5 + $0x10] sm:$0xff]
        %v225 = vld [vmem:[#allocation5 + $0x18] sm:$0xff]
        %v226 = vld [vmem:[#allocation5 + $0x20] sm:$0xff]
        %v227 = vld [vmem:[#allocation5 + $0x28] sm:$0xff]
        %v228 = vld [vmem:[#allocation5 + $0x30] sm:$0xff]
        %v229 = vld [vmem:[#allocation5 + $0x38] sm:$0xff]
        %v230 = vld [vmem:[#allocation5 + $0x40] sm:$0xff]
        %v231 = vld [vmem:[#allocation5 + $0x48] sm:$0xff]
        %v232 = vld [vmem:[#allocation5 + $0x50] sm:$0xff]
        %v233 = vld [vmem:[#allocation5 + $0x58] sm:$0xff]
        %v234 = vld [vmem:[#allocation5 + $0x60] sm:$0xff]
        %v235 = vld [vmem:[#allocation5 + $0x68] sm:$0xff]
        %v236 = vld [vmem:[#allocation5 + $0x70] sm:$0xff]
        %v237 = vld [vmem:[#allocation5 + $0x78] sm:$0xff]
        %v238 = vld [vmem:[#allocation5 + $0x80] sm:$0xff]
        %v239 = vld [vmem:[#allocation5 + $0x88] sm:$0xff]
        %v240 = vld [vmem:[#allocation5 + $0x90] sm:$0xff]
        %v241 = vld [vmem:[#allocation5 + $0x98] sm:$0xff]
        %v242 = vld [vmem:[#allocation5 + $0xa0] sm:$0xff]
        %v243 = vld [vmem:[#allocation5 + $0xa8] sm:$0xff]
        %v244 = vld [vmem:[#allocation5 + $0xb0] sm:$0xff]
        %v245 = vld [vmem:[#allocation5 + $0xb8] sm:$0xff]
        %v246 = vld [vmem:[#allocation5 + $0xc0] sm:$0xff]
        %v247 = vld [vmem:[#allocation5 + $0xc8] sm:$0xff]
        %v248 = vld [vmem:[#allocation5 + $0xd0] sm:$0xff]
        %v249 = vld [vmem:[#allocation5 + $0xd8] sm:$0xff]
        %v250 = vld [vmem:[#allocation5 + $0xe0] sm:$0xff]
        %v251 = vld [vmem:[#allocation5 + $0xe8] sm:$0xff]
        %v252 = vld [vmem:[#allocation5 + $0xf0] sm:$0xff]
        %v253 = vld [vmem:[#allocation5 + $0xf8] sm:$0xff]
        %s254 = scalar_lea.vmem [#allocation5], 512
        %v255 = vld [vmem:[%s254] ss:$8 sm:$0x3]
        %v257 = vperm.slane %v255, 0
        %v258 = vperm.slane %v255, 1
        %261 = vmatpush.msra.mxu0 %v252
        %262 = vmatpush.msra.mxu0 %v250
        %263 = vmatpush.msra.mxu0 %v248
        %264 = vmatpush.msra.mxu0 %v246
        %265 = vmatpush.msra.mxu0 %v244
        %266 = vmatpush.msra.mxu0 %v242
        %267 = vmatpush.msra.mxu0 %v240
        %268 = vmatpush.msra.mxu0 %v238
        %269 = vmatpush.msra.mxu0 %v236
        %270 = vmatpush.msra.mxu0 %v234
        %271 = vmatpush.msra.mxu0 %v232
        %272 = vmatpush.msra.mxu0 %v230
        %273 = vmatpush.msra.mxu0 %v228
        %274 = vmatpush.msra.mxu0 %v226
        %275 = vmatpush.msra.mxu0 %v224
        %276 = vmatpush.msra.mxu0 %v222
        %277 = vmatmul.f32.gmra.mxu0 %v221
        %v278 = vpop.f32.mrf.mxu0
        %v279 = vadd.f32 %v257, %v278
        %280 = vdwg.mxu0
        %281 = vmatpush.msra.mxu0 %v253
        %282 = vmatpush.msra.mxu0 %v251
        %283 = vmatpush.msra.mxu0 %v249
        %284 = vmatpush.msra.mxu0 %v247
        %285 = vmatpush.msra.mxu0 %v245
        %286 = vmatpush.msra.mxu0 %v243
        %287 = vmatpush.msra.mxu0 %v241
        %288 = vmatpush.msra.mxu0 %v239
        %289 = vmatpush.msra.mxu0 %v237
        %290 = vmatpush.msra.mxu0 %v235
        %291 = vmatpush.msra.mxu0 %v233
        %292 = vmatpush.msra.mxu0 %v231
        %293 = vmatpush.msra.mxu0 %v229
        %294 = vmatpush.msra.mxu0 %v227
        %295 = vmatpush.msra.mxu0 %v225
        %296 = vmatpush.msra.mxu0 %v223
        %297 = vmatmul.f32.gmra.mxu0 %v221
        %v298 = vpop.f32.mrf.mxu0
        %v299 = vadd.f32 %v258, %v298
        %300 = vdwg.mxu0
        %v301 = vmax.f32 %v279, 0.0
        %v302 = vmax.f32 %v299, 0.0
        %v303 = vld [vmem:[#allocation5 + $0x100] sm:$0xff]
        %v304 = vld [vmem:[#allocation5 + $0x110] sm:$0xff]
        %v305 = vld [vmem:[#allocation5 + $0x120] sm:$0xff]
        %v306 = vld [vmem:[#allocation5 + $0x130] sm:$0xff]
        %v307 = vld [vmem:[#allocation5 + $0x140] sm:$0xff]
        %v308 = vld [vmem:[#allocation5 + $0x150] sm:$0xff]
        %v309 = vld [vmem:[#allocation5 + $0x160] sm:$0xff]
        %v310 = vld [vmem:[#allocation5 + $0x170] sm:$0xff]
        %v311 = vld [vmem:[#allocation5 + $0x180] sm:$0xff]
        %v312 = vld [vmem:[#allocation5 + $0x190] sm:$0xff]
        %v313 = vld [vmem:[#allocation5 + $0x1a0] sm:$0xff]
        %v314 = vld [vmem:[#allocation5 + $0x1b0] sm:$0xff]
        %v315 = vld [vmem:[#allocation5 + $0x1c0] sm:$0xff]
        %v316 = vld [vmem:[#allocation5 + $0x1d0] sm:$0xff]
        %v317 = vld [vmem:[#allocation5 + $0x1e0] sm:$0xff]
        %v318 = vld [vmem:[#allocation5 + $0x1f0] sm:$0xff]
        %319 = vmatpush.msra.mxu0 %v318
        %320 = vmatpush.msra.mxu0 %v317
        %321 = vmatpush.msra.mxu0 %v316
        %322 = vmatpush.msra.mxu0 %v315
        %323 = vmatpush.msra.mxu0 %v314
        %324 = vmatpush.msra.mxu0 %v313
        %325 = vmatpush.msra.mxu0 %v312
        %326 = vmatpush.msra.mxu0 %v311
        %327 = vmatpush.msra.mxu0 %v310
        %328 = vmatpush.msra.mxu0 %v309
        %329 = vmatpush.msra.mxu0 %v308
        %330 = vmatpush.msra.mxu0 %v307
        %331 = vmatpush.msra.mxu0 %v306
        %332 = vmatpush.msra.mxu0 %v305
        %333 = vmatpush.msra.mxu0 %v304
        %334 = vmatpush.msra.mxu0 %v303
        %335 = vmatmul.f32.gmra.mxu0 %v301
        %v336 = vpop.f32.mrf.mxu0
        %v337 = vadd.f32 0.0, %v336
        %338 = vdwg.mxu0
        %v339 = vld [vmem:[#allocation5 + $0x108] sm:$0xff]
        %v340 = vld [vmem:[#allocation5 + $0x118] sm:$0xff]
        %v341 = vld [vmem:[#allocation5 + $0x128] sm:$0xff]
        %v342 = vld [vmem:[#allocation5 + $0x138] sm:$0xff]
        %v343 = vld [vmem:[#allocation5 + $0x148] sm:$0xff]
        %v344 = vld [vmem:[#allocation5 + $0x158] sm:$0xff]
        %v345 = vld [vmem:[#allocation5 + $0x168] sm:$0xff]
        %v346 = vld [vmem:[#allocation5 + $0x178] sm:$0xff]
        %v347 = vld [vmem:[#allocation5 + $0x188] sm:$0xff]
        %v348 = vld [vmem:[#allocation5 + $0x198] sm:$0xff]
        %v349 = vld [vmem:[#allocation5 + $0x1a8] sm:$0xff]
        %v350 = vld [vmem:[#allocation5 + $0x1b8] sm:$0xff]
        %v351 = vld [vmem:[#allocation5 + $0x1c8] sm:$0xff]
        %v352 = vld [vmem:[#allocation5 + $0x1d8] sm:$0xff]
        %v353 = vld [vmem:[#allocation5 + $0x1e8] sm:$0xff]
        %v354 = vld [vmem:[#allocation5 + $0x1f8] sm:$0xff]
        %355 = vmatpush.msra.mxu0 %v354
        %356 = vmatpush.msra.mxu0 %v353
        %357 = vmatpush.msra.mxu0 %v352
        %358 = vmatpush.msra.mxu0 %v351
        %359 = vmatpush.msra.mxu0 %v350
        %360 = vmatpush.msra.mxu0 %v349
        %361 = vmatpush.msra.mxu0 %v348
        %362 = vmatpush.msra.mxu0 %v347
        %363 = vmatpush.msra.mxu0 %v346
        %364 = vmatpush.msra.mxu0 %v345
        %365 = vmatpush.msra.mxu0 %v344
        %366 = vmatpush.msra.mxu0 %v343
        %367 = vmatpush.msra.mxu0 %v342
        %368 = vmatpush.msra.mxu0 %v341
        %369 = vmatpush.msra.mxu0 %v340
        %370 = vmatpush.msra.mxu0 %v339
        %371 = vmatmul.f32.gmra.mxu0 %v302
        %v372 = vpop.f32.mrf.mxu0
        %v373 = vadd.f32 0.0, %v372
        %374 = vdwg.mxu0
        %s375 = scalar_lea.vmem [#allocation5], 544
        %v376 = vld [vmem:[%s375] ss:$8 sm:$0x3]
        %v378 = vperm.slane %v376, 0
        %v379 = vperm.slane %v376, 1
        %v382 = vadd.f32 %v337, %v378
        %v383 = vadd.f32 %v373, %v379
        %v384 = vmax.f32 %v382, 0.0
        %v385 = vmax.f32 %v383, 0.0
        %v386 = vld [vmem:[#allocation7] sm:$0xff]
        %v387 = vld [vmem:[#allocation7 + $0x8] sm:$0xff]
        %v388 = vld [vmem:[#allocation7 + $0x10] sm:$0xff]
        %v389 = vld [vmem:[#allocation7 + $0x18] sm:$0xff]
        %v390 = vld [vmem:[#allocation7 + $0x20] sm:$0xff]
        %v391 = vld [vmem:[#allocation7 + $0x28] sm:$0xff]
        %v392 = vld [vmem:[#allocation7 + $0x30] sm:$0xff]
        %v393 = vld [vmem:[#allocation7 + $0x38] sm:$0xff]
        %v394 = vld [vmem:[#allocation7 + $0x40] sm:$0xff]
        %v395 = vld [vmem:[#allocation7 + $0x48] sm:$0xff]
        %v396 = vld [vmem:[#allocation7 + $0x50] sm:$0xff]
        %v397 = vld [vmem:[#allocation7 + $0x58] sm:$0xff]
        %v398 = vld [vmem:[#allocation7 + $0x60] sm:$0xff]
        %v399 = vld [vmem:[#allocation7 + $0x68] sm:$0xff]
        %v400 = vld [vmem:[#allocation7 + $0x70] sm:$0xff]
        %v401 = vld [vmem:[#allocation7 + $0x78] sm:$0xff]
        %v402 = vld [vmem:[#allocation7 + $0x80] sm:$0xff]
        %v403 = vld [vmem:[#allocation7 + $0x88] sm:$0xff]
        %v404 = vld [vmem:[#allocation7 + $0x90] sm:$0xff]
        %v405 = vld [vmem:[#allocation7 + $0x98] sm:$0xff]
        %v406 = vld [vmem:[#allocation7 + $0xa0] sm:$0xff]
        %v407 = vld [vmem:[#allocation7 + $0xa8] sm:$0xff]
        %v408 = vld [vmem:[#allocation7 + $0xb0] sm:$0xff]
        %v409 = vld [vmem:[#allocation7 + $0xb8] sm:$0xff]
        %v410 = vld [vmem:[#allocation7 + $0xc0] sm:$0xff]
        %v411 = vld [vmem:[#allocation7 + $0xc8] sm:$0xff]
        %v412 = vld [vmem:[#allocation7 + $0xd0] sm:$0xff]
        %v413 = vld [vmem:[#allocation7 + $0xd8] sm:$0xff]
        %v414 = vld [vmem:[#allocation7 + $0xe0] sm:$0xff]
        %v415 = vld [vmem:[#allocation7 + $0xe8] sm:$0xff]
        %v416 = vld [vmem:[#allocation7 + $0xf0] sm:$0xff]
        %v417 = vld [vmem:[#allocation7 + $0xf8] sm:$0xff]
        %v418 = vld [vmem:[#allocation7 + $0x100] sm:$0x1]
        %v419 = vperm.slane %v418, 0
        %420 = vmatpush.msra.mxu0 %v401
        %421 = vmatpush.msra.mxu0 %v400
        %422 = vmatpush.msra.mxu0 %v399
        %423 = vmatpush.msra.mxu0 %v398
        %424 = vmatpush.msra.mxu0 %v397
        %425 = vmatpush.msra.mxu0 %v396
        %426 = vmatpush.msra.mxu0 %v395
        %427 = vmatpush.msra.mxu0 %v394
        %428 = vmatpush.msra.mxu0 %v393
        %429 = vmatpush.msra.mxu0 %v392
        %430 = vmatpush.msra.mxu0 %v391
        %431 = vmatpush.msra.mxu0 %v390
        %432 = vmatpush.msra.mxu0 %v389
        %433 = vmatpush.msra.mxu0 %v388
        %434 = vmatpush.msra.mxu0 %v387
        %435 = vmatpush.msra.mxu0 %v386
        %436 = vmatmul.f32.gmra.mxu0 %v384
        %v437 = vpop.f32.mrf.mxu0
        %v438 = vadd.f32 %v419, %v437
        %439 = vdwg.mxu0
        %440 = vmatpush.msra.mxu0 %v417
        %441 = vmatpush.msra.mxu0 %v416
        %442 = vmatpush.msra.mxu0 %v415
        %443 = vmatpush.msra.mxu0 %v414
        %444 = vmatpush.msra.mxu0 %v413
        %445 = vmatpush.msra.mxu0 %v412
        %446 = vmatpush.msra.mxu0 %v411
        %447 = vmatpush.msra.mxu0 %v410
        %448 = vmatpush.msra.mxu0 %v409
        %449 = vmatpush.msra.mxu0 %v408
        %450 = vmatpush.msra.mxu0 %v407
        %451 = vmatpush.msra.mxu0 %v406
        %452 = vmatpush.msra.mxu0 %v405
        %453 = vmatpush.msra.mxu0 %v404
        %454 = vmatpush.msra.mxu0 %v403
        %455 = vmatpush.msra.mxu0 %v402
        %456 = vmatmul.f32.gmra.mxu0 %v385
        %v457 = vpop.f32.mrf.mxu0
        %v458 = vadd.f32 %v438, %v457
        %459 = vdwg.mxu0
        %v460 = vtanh.pop %v458
        %v461 = vld [vmem:[#allocation7 + $0x108] sm:$0x1]
        %v462 = vperm.slane %v461, 0
        %v463 = vmul.f32 %v462, %v221
        %v464 = vadd.f32 %v460, %v463
        %v465 = vmax.f32 %v464, -1.0
        %v466 = vmin.f32 %v465, 1.0
        %v467 = vsub.f32 %v466, %v460
        %v468 = vld [vmem:[#allocation7 + $0x118] sm:$0x1]
        %v469 = vmul.f32 %v467, %v467
        %v470 = vld [vmem:[#allocation7 + $0x110] sm:$0x1]
        %v471 = vperm.slane %v470, 0
        %v472 = vmul.f32 %v469, %v471
        %v473 = vperm.slane %v468, 0
        %v474 = vsub.f32 %v473, %v472
        %475 = vadd.xlane.f32.xlu0 %v474
        %v476 = vpop.xlane.xlu0 %475
        %v477 = vlaneseq
        %v478 = vand.u32 %v477, 127
        %vm479 = vcmp.lt.s32.totalorder %v478, 4
        %v480 = vsel %vm479, %v466, 0.0
        %vm481 = vcmp.eq.s32.totalorder %v478, 4
        %483 = vset.pattern.permute.xlu0 0
        %484 = vperm.xlu0 %483, %v460
        %v485 = vpop.permute.xlu0 %484
        %v487 = vsel %vm481, %v485, %v480
        %vm488 = vcmp.eq.s32.totalorder %v478, 5
        %489 = vset.pattern.permute.xlu0 1
        %490 = vperm.xlu0 %489, %v460
        %v491 = vpop.permute.xlu0 %490
        %v493 = vsel %vm488, %v491, %v487
        %vm494 = vcmp.eq.s32.totalorder %v478, 6
        %495 = vset.pattern.permute.xlu0 2
        %496 = vperm.xlu0 %495, %v460
        %v497 = vpop.permute.xlu0 %496
        %v499 = vsel %vm494, %v497, %v493
        %vm500 = vcmp.eq.s32.totalorder %v478, 7
        %501 = vset.pattern.permute.xlu0 3
        %502 = vperm.xlu0 %501, %v460
        %v503 = vpop.permute.xlu0 %502
        %v505 = vsel %vm500, %v503, %v499
        %vm506 = vcmp.eq.s32.totalorder %v478, 8
        %508 = vset.pattern.permute.xlu0 4
        %509 = vperm.xlu0 %508, %v458
        %v510 = vpop.permute.xlu0 %509
        %v512 = vsel %vm506, %v510, %v505
        %vm513 = vcmp.eq.s32.totalorder %v478, 9
        %v514 = vsel %vm513, %v476, %v512
        %vm515 = vcmp.eq.s32.totalorder %v478, 10
        %v516 = vld [vmem:[#allocation7 + $0x120] sm:$0x1]
        %s518 = vtos %v516
        %v519 = vstv %s518
        %v521 = vsel %vm515, %v519, %v514
        %522 = vst [vmem:[%s220] sm:$0xff] %v521
        %s523 = sand.u32 %s97, 1
        %s524 = scalar_lea.sflag [#allocation4], %s523
        %s525 = sand.u32 %s97, 1
        %s526 = smul.addr %s525, 8
        %s527 = scalar_lea.vmem [#allocation8], %s526
        // Predicated region
        $region45: #{tpu_custom_call.1} parent=31 // pred_check
          %p528 = pneg %p107
        $region46: #{tpu_custom_call.1} parent=31 // pred_check_branch
          %530 = sbr.rel (%p528) target = $region48
        $region47: #{tpu_custom_call.1} parent=31 // pred_region
          %532 = vsyncadd %s524, 0
          %s533 = smul.addr %s21, 8
          %s534 = scalar_lea.hbm %s3, %s533
          %s536 = sshll.u32 %s527, 4
          %s537 = int_to_ptr.vmem [resolvable:$true] %s536
          %s538 = sshll.u32 %s534, 4
          %s539 = int_to_ptr.hbm [resolvable:$true] %s538
          %541 = dma.vmem_to_hbm [thread:$0]  %s537, 128, %s539, %s524
        $region48: #{tpu_custom_call.1} parent=31 // pred_fallthru
          _
      $region32: #{tpu_custom_call.1} parent=5 // pred_fallthru
        _
      %p542 = scmp.le.s32.totalorder 2, %s16
      // Predicated region
      $region49: #{tpu_custom_call.1} parent=5 // pred_check
        %p543 = pneg %p542
      $region50: #{tpu_custom_call.1} parent=5 // pred_check_branch
        %545 = sbr.rel (%p543) target = $region52
      $region51: #{tpu_custom_call.1} parent=5 // pred_region
        %s546 = ssub.s32 %s16, 2
        // Predicated region
        $region53: #{tpu_custom_call.1} parent=51 // pred_check
          %p547 = pneg %p113
        $region54: #{tpu_custom_call.1} parent=51 // pred_check_branch
          %549 = sbr.rel (%p547) target = $region56
        $region55: #{tpu_custom_call.1} parent=51 // pred_region
          %s550 = sand.u32 %s98, 1
          %s551 = scalar_lea.sflag [#allocation4], %s550
          %s552 = sand.u32 %s98, 1
          %s553 = smul.addr %s552, 8
          %s554 = scalar_lea.vmem [#allocation8], %s553
          %556 = dma.done %s551, 128
        $region56: #{tpu_custom_call.1} parent=51 // pred_fallthru
          _
      $region52: #{tpu_custom_call.1} parent=5 // pred_fallthru
        _
    $region6: #{tpu_custom_call.1} parent=1 // loop_footer
      %s20 = sadd.s32 1, %s16
    $region7: #{tpu_custom_call.1} parent=1 // loop_footer_branch
      %15 = sbr.rel target = $region3
    $region8: #{tpu_custom_call.1} parent=1 // loop_exit
      _
    %557 = vsyncpa [#allocation3], 1
    %s558 = scalar_lea.sflag [#allocation3], 1
    %559 = vsyncpa %s558, 1
    %560 = vsyncpa [#allocation6], 1
    %561 = vsyncpa [#allocation4], 1
    %s562 = scalar_lea.sflag [#allocation4], 1
    %563 = vsyncpa %s562, 1

</llo_original>
